<compile_context>
chip_gen: v5e
topology: v5e:2x2
jax: 0.10.0
libtpu: 0.0.40
codegen_flags: <defaults>
</compile_context>

<pallas_src>
import functools

import jax
import jax.numpy as jnp
from jax.experimental import pallas as pl
from jax.experimental.pallas import tpu as pltpu


# ------------------------------------------------------------------ kernel --

def _dilate_attn_kernel(q_ref, k_ref, v_ref, mask_ref, o_ref, *,
                        head_dim, kk, hw, lpad, offsets, scale):
    # Block shapes (batch & head dims squeezed / sliced by the BlockSpecs):
    #   q_ref, o_ref : (head_dim, HW)          HW on the 128-lane axis
    #   k_ref, v_ref : (head_dim, HW + halo)   flat-padded so every neighbour
    #                                          view is a contiguous lane slice
    #   mask_ref     : (kk, HW)  {0,1} border-validity masks per neighbour
    q = q_ref[...].astype(jnp.float32) * scale          # (hd, HW)
    mask = mask_ref[...].astype(jnp.float32)            # (kk, HW)

    # scores packed along the kk (sublane) axis: s[p, l] = q[:, l] . k_p[:, l]
    rows = []
    for p in range(kk):
        kp = k_ref[:, pl.ds(lpad + offsets[p], hw)].astype(jnp.float32)
        rows.append(jnp.sum(q * kp, axis=0, keepdims=True))
    s = jnp.concatenate(rows, axis=0) * mask             # OOB neighbours -> score 0
                                                         # (zero-pad semantics)

    # softmax over the kk neighbour axis on dense (kk, HW) vregs
    m = jnp.max(s, axis=0, keepdims=True)                # (1, HW)   XLU reduce
    e = jnp.exp(s - m)                                   # (kk, HW)  EUP
    denom = jnp.sum(e, axis=0, keepdims=True)            # (1, HW)
    inv = pl.reciprocal(denom, approx=True)              # EUP slot
    w = e * mask                                         # OOB neighbours add 0 to output

    # weighted sum over the shifted v views; normalise once at the end
    acc = jnp.zeros((head_dim, hw), jnp.float32)
    for p in range(kk):
        vp = v_ref[:, pl.ds(lpad + offsets[p], hw)].astype(jnp.float32)
        acc = acc + w[p:p + 1, :] * vp
    o_ref[...] = (acc * inv).astype(o_ref.dtype)


# ----------------------------------------------------------------- wrapper --

def _neighbour_offsets_and_masks(H, W, kernel_size, dilation):
    """Flat (row-major) neighbour offsets and {0,1} in-image validity masks."""
    pad = dilation * (kernel_size - 1) // 2
    ys = jnp.arange(H).reshape(H, 1)
    xs = jnp.arange(W).reshape(1, W)
    offsets, masks = [], []
    for ky in range(kernel_size):
        for kx in range(kernel_size):
            dy = ky * dilation - pad
            dx = kx * dilation - pad
            offsets.append(dy * W + dx)
            valid = ((ys + dy >= 0) & (ys + dy < H) &
                     (xs + dx >= 0) & (xs + dx < W))
            masks.append(valid.reshape(1, H * W))
    mask = jnp.concatenate(masks, axis=0).astype(jnp.float32)   # (kk, HW)
    return tuple(offsets), mask


@functools.partial(jax.jit,
                   static_argnames=("head_dim", "kernel_size", "dilation", "qk_scale"))
def dilate_attention(q, k, v, head_dim, kernel_size=3, dilation=1, qk_scale=None):
    """DilateAttention.forward (eval).  q/k/v: (B, d, H, W) -> (B, H, W, d)."""
    B, d, H, W = q.shape
    heads = d // head_dim
    kk = kernel_size * kernel_size
    HW = H * W
    scale = float(qk_scale) if qk_scale is not None else float(head_dim) ** -0.5

    offsets, mask = _neighbour_offsets_and_masks(H, W, kernel_size, dilation)
    lpad = max(0, -min(offsets))
    rpad = max(0, max(offsets))
    hwp = HW + lpad + rpad

    # k / v are sent to the kernel exactly once (flat-padded by the halo only),
    # instead of materialising the (B, kk, d, HW) unfold in HBM.
    q2 = q.reshape(B, d, HW)
    k2 = jnp.pad(k.reshape(B, d, HW), ((0, 0), (0, 0), (lpad, rpad)))
    v2 = jnp.pad(v.reshape(B, d, HW), ((0, 0), (0, 0), (lpad, rpad)))

    kernel = functools.partial(_dilate_attn_kernel, head_dim=head_dim, kk=kk,
                               hw=HW, lpad=lpad, offsets=offsets, scale=scale)

    out = pl.pallas_call(
        kernel,
        out_shape=jax.ShapeDtypeStruct((B, d, HW), q.dtype),
        grid=(B, heads),
        in_specs=[pl.BlockSpec((None, head_dim, HW), lambda b, h: (b, h, 0)),
                  pl.BlockSpec((None, head_dim, hwp), lambda b, h: (b, h, 0)),
                  pl.BlockSpec((None, head_dim, hwp), lambda b, h: (b, h, 0)),
                  pl.BlockSpec((kk, HW), lambda b, h: (0, 0))],
        out_specs=pl.BlockSpec((None, head_dim, HW), lambda b, h: (b, h, 0)),
        compiler_params=pltpu.CompilerParams(
            dimension_semantics=("parallel", "parallel")),
    )(q2, k2, v2, mask)

    # Kernel stores lane-dense (d, HW); this transpose exists only to match the
    # PyTorch (B, H, W, d) return layout (drop it if the consumer takes BCHW).
    return out.reshape(B, d, H, W).transpose(0, 2, 3, 1)


# --------------------------------------------------------------- reference --

def _dilate_attention_ref(q, k, v, head_dim, kernel_size=3, dilation=1, qk_scale=None):
    """Direct JAX transcription of the PyTorch forward (verification only)."""
    B, d, H, W = q.shape
    heads = d // head_dim
    kk = kernel_size * kernel_size
    HW = H * W
    scale = qk_scale if qk_scale is not None else head_dim ** (-0.5)
    pad = dilation * (kernel_size - 1) // 2

    def unfold(x):   # -> (B, d*kk, HW), torch nn.Unfold channel ordering (c*kk + p)
        xp = jnp.pad(x, ((0, 0), (0, 0), (pad, pad), (pad, pad)))
        cols = [xp[:, :, ky * dilation:ky * dilation + H, kx * dilation:kx * dilation + W]
                for ky in range(kernel_size) for kx in range(kernel_size)]
        return jnp.stack(cols, axis=2).reshape(B, d * kk, HW)

    qr = q.reshape(B, heads, head_dim, 1, HW).transpose(0, 1, 4, 3, 2)           # (B,h,HW,1,hd)
    ku = unfold(k).reshape(B, heads, head_dim, kk, HW).transpose(0, 1, 4, 2, 3)  # (B,h,HW,hd,kk)
    attn = jax.nn.softmax((qr @ ku) * scale, axis=-1)                            # (B,h,HW,1,kk)
    vu = unfold(v).reshape(B, heads, head_dim, kk, HW).transpose(0, 1, 4, 3, 2)  # (B,h,HW,kk,hd)
    return (attn @ vu).transpose(0, 2, 1, 3, 4).reshape(B, H, W, d)


# --------------------------------------------------------------------- main --

if __name__ == "__main__":
    B, head_dim, heads = 2, 16, 2
    d = heads * head_dim                 # 32
    H = W = 16                           # HW = 256 -> lane-dense (2 full vregs)
    kernel_size = 3

    key = jax.random.PRNGKey(0)
    kq, kk_, kv = jax.random.split(key, 3)
    q = jax.random.normal(kq, (B, d, H, W), jnp.float32)
    k = jax.random.normal(kk_, (B, d, H, W), jnp.float32)
    v = jax.random.normal(kv, (B, d, H, W), jnp.float32)

    for dilation in (1, 2):
        out = dilate_attention(q, k, v, head_dim=head_dim,
                               kernel_size=kernel_size, dilation=dilation)
        out = jax.block_until_ready(out)
        ref = _dilate_attention_ref(q, k, v, head_dim, kernel_size, dilation)
        assert out.shape == (B, H, W, d)
        assert bool(jnp.all(jnp.isfinite(out)))
        max_err = float(jnp.max(jnp.abs(out - ref)))
        assert max_err < 1e-2, f"dilation={dilation}: max abs diff vs ref = {max_err}"

    print("KERNEL_OK")
</pallas_src>

<mosaic_0001>
module attributes {stable_mosaic.version = 11 : i64} {
  func.func @_dilate_attn_kernel(%arg0: i32, %arg1: i32, %arg2: memref<1x16x256xf32, #tpu.memory_space<vmem>>, %arg3: memref<1x16x290xf32, #tpu.memory_space<vmem>>, %arg4: memref<1x16x290xf32, #tpu.memory_space<vmem>>, %arg5: memref<9x256xf32, #tpu.memory_space<vmem>>, %arg6: memref<1x16x256xf32, #tpu.memory_space<vmem>>) attributes {dimension_semantics = [#tpu.dimension_semantics<parallel>, #tpu.dimension_semantics<parallel>], iteration_bounds = array<i64: 2, 2>, scalar_prefetch = 0 : i64, scratch_operands = 0 : i64, tpu.core_type = #tpu.core_type<tc>, window_params = [{transform_indices = @transform_0, window_bounds = array<i64: 1, 16, 256>}, {transform_indices = @transform_1, window_bounds = array<i64: 1, 16, 290>}, {transform_indices = @transform_2, window_bounds = array<i64: 1, 16, 290>}, {pipeline_mode = #tpu.pipeline_mode<synchronous>, transform_indices = @transform_3, window_bounds = array<i64: 9, 256>}, {transform_indices = @transform_4, window_bounds = array<i64: 1, 16, 256>}]} {
    %c0 = arith.constant 0 : index
    %c0_0 = arith.constant 0 : index
    %c0_1 = arith.constant 0 : index
    %0 = vector.load %arg2[%c0, %c0_0, %c0_1] : memref<1x16x256xf32, #tpu.memory_space<vmem>>, vector<1x16x256xf32>
    %1 = vector.shape_cast %0 : vector<1x16x256xf32> to vector<16x256xf32>
    %cst = arith.constant 2.500000e-01 : f32
    %2 = vector.broadcast %cst : f32 to vector<16x256xf32>
    %3 = arith.mulf %1, %2 : vector<16x256xf32>
    %c0_2 = arith.constant 0 : index
    %c0_3 = arith.constant 0 : index
    %4 = vector.load %arg5[%c0_2, %c0_3] : memref<9x256xf32, #tpu.memory_space<vmem>>, vector<9x256xf32>
    %c0_4 = arith.constant 0 : index
    %c0_5 = arith.constant 0 : index
    %c0_6 = arith.constant 0 : index
    %5 = vector.load %arg3[%c0_4, %c0_5, %c0_6] : memref<1x16x290xf32, #tpu.memory_space<vmem>>, vector<1x16x256xf32>
    %6 = vector.shape_cast %5 : vector<1x16x256xf32> to vector<16x256xf32>
    %7 = arith.mulf %3, %6 : vector<16x256xf32>
    %cst_7 = arith.constant dense<0.000000e+00> : vector<256xf32>
    %8 = vector.multi_reduction <add>, %7, %cst_7 [0] : vector<16x256xf32> to vector<256xf32>
    %9 = vector.shape_cast %8 : vector<256xf32> to vector<1x256xf32>
    %c0_8 = arith.constant 0 : index
    %c0_9 = arith.constant 0 : index
    %c1 = arith.constant 1 : index
    %10 = vector.load %arg3[%c0_8, %c0_9, %c1] : memref<1x16x290xf32, #tpu.memory_space<vmem>>, vector<1x16x256xf32>
    %11 = vector.shape_cast %10 : vector<1x16x256xf32> to vector<16x256xf32>
    %12 = arith.mulf %3, %11 : vector<16x256xf32>
    %cst_10 = arith.constant dense<0.000000e+00> : vector<256xf32>
    %13 = vector.multi_reduction <add>, %12, %cst_10 [0] : vector<16x256xf32> to vector<256xf32>
    %14 = vector.shape_cast %13 : vector<256xf32> to vector<1x256xf32>
    %c0_11 = arith.constant 0 : index
    %c0_12 = arith.constant 0 : index
    %c2 = arith.constant 2 : index
    %15 = vector.load %arg3[%c0_11, %c0_12, %c2] : memref<1x16x290xf32, #tpu.memory_space<vmem>>, vector<1x16x256xf32>
    %16 = vector.shape_cast %15 : vector<1x16x256xf32> to vector<16x256xf32>
    %17 = arith.mulf %3, %16 : vector<16x256xf32>
    %cst_13 = arith.constant dense<0.000000e+00> : vector<256xf32>
    %18 = vector.multi_reduction <add>, %17, %cst_13 [0] : vector<16x256xf32> to vector<256xf32>
    %19 = vector.shape_cast %18 : vector<256xf32> to vector<1x256xf32>
    %c0_14 = arith.constant 0 : index
    %c0_15 = arith.constant 0 : index
    %c16 = arith.constant 16 : index
    %20 = vector.load %arg3[%c0_14, %c0_15, %c16] : memref<1x16x290xf32, #tpu.memory_space<vmem>>, vector<1x16x256xf32>
    %21 = vector.shape_cast %20 : vector<1x16x256xf32> to vector<16x256xf32>
    %22 = arith.mulf %3, %21 : vector<16x256xf32>
    %cst_16 = arith.constant dense<0.000000e+00> : vector<256xf32>
    %23 = vector.multi_reduction <add>, %22, %cst_16 [0] : vector<16x256xf32> to vector<256xf32>
    %24 = vector.shape_cast %23 : vector<256xf32> to vector<1x256xf32>
    %c0_17 = arith.constant 0 : index
    %c0_18 = arith.constant 0 : index
    %c17 = arith.constant 17 : index
    %25 = vector.load %arg3[%c0_17, %c0_18, %c17] : memref<1x16x290xf32, #tpu.memory_space<vmem>>, vector<1x16x256xf32>
    %26 = vector.shape_cast %25 : vector<1x16x256xf32> to vector<16x256xf32>
    %27 = arith.mulf %3, %26 : vector<16x256xf32>
    %cst_19 = arith.constant dense<0.000000e+00> : vector<256xf32>
    %28 = vector.multi_reduction <add>, %27, %cst_19 [0] : vector<16x256xf32> to vector<256xf32>
    %29 = vector.shape_cast %28 : vector<256xf32> to vector<1x256xf32>
    %c0_20 = arith.constant 0 : index
    %c0_21 = arith.constant 0 : index
    %c18 = arith.constant 18 : index
    %30 = vector.load %arg3[%c0_20, %c0_21, %c18] : memref<1x16x290xf32, #tpu.memory_space<vmem>>, vector<1x16x256xf32>
    %31 = vector.shape_cast %30 : vector<1x16x256xf32> to vector<16x256xf32>
    %32 = arith.mulf %3, %31 : vector<16x256xf32>
    %cst_22 = arith.constant dense<0.000000e+00> : vector<256xf32>
    %33 = vector.multi_reduction <add>, %32, %cst_22 [0] : vector<16x256xf32> to vector<256xf32>
    %34 = vector.shape_cast %33 : vector<256xf32> to vector<1x256xf32>
    %c0_23 = arith.constant 0 : index
    %c0_24 = arith.constant 0 : index
    %c32 = arith.constant 32 : index
    %35 = vector.load %arg3[%c0_23, %c0_24, %c32] : memref<1x16x290xf32, #tpu.memory_space<vmem>>, vector<1x16x256xf32>
    %36 = vector.shape_cast %35 : vector<1x16x256xf32> to vector<16x256xf32>
    %37 = arith.mulf %3, %36 : vector<16x256xf32>
    %cst_25 = arith.constant dense<0.000000e+00> : vector<256xf32>
    %38 = vector.multi_reduction <add>, %37, %cst_25 [0] : vector<16x256xf32> to vector<256xf32>
    %39 = vector.shape_cast %38 : vector<256xf32> to vector<1x256xf32>
    %c0_26 = arith.constant 0 : index
    %c0_27 = arith.constant 0 : index
    %c33 = arith.constant 33 : index
    %40 = vector.load %arg3[%c0_26, %c0_27, %c33] : memref<1x16x290xf32, #tpu.memory_space<vmem>>, vector<1x16x256xf32>
    %41 = vector.shape_cast %40 : vector<1x16x256xf32> to vector<16x256xf32>
    %42 = arith.mulf %3, %41 : vector<16x256xf32>
    %cst_28 = arith.constant dense<0.000000e+00> : vector<256xf32>
    %43 = vector.multi_reduction <add>, %42, %cst_28 [0] : vector<16x256xf32> to vector<256xf32>
    %44 = vector.shape_cast %43 : vector<256xf32> to vector<1x256xf32>
    %c0_29 = arith.constant 0 : index
    %c0_30 = arith.constant 0 : index
    %c34 = arith.constant 34 : index
    %45 = vector.load %arg3[%c0_29, %c0_30, %c34] : memref<1x16x290xf32, #tpu.memory_space<vmem>>, vector<1x16x256xf32>
    %46 = vector.shape_cast %45 : vector<1x16x256xf32> to vector<16x256xf32>
    %47 = arith.mulf %3, %46 : vector<16x256xf32>
    %cst_31 = arith.constant dense<0.000000e+00> : vector<256xf32>
    %48 = vector.multi_reduction <add>, %47, %cst_31 [0] : vector<16x256xf32> to vector<256xf32>
    %49 = vector.shape_cast %48 : vector<256xf32> to vector<1x256xf32>
    %50 = tpu.concatenate %9, %14, %19, %24, %29, %34, %39, %44, %49 in 0 : vector<1x256xf32>, vector<1x256xf32>, vector<1x256xf32>, vector<1x256xf32>, vector<1x256xf32>, vector<1x256xf32>, vector<1x256xf32>, vector<1x256xf32>, vector<1x256xf32> -> vector<9x256xf32>
    %51 = arith.mulf %50, %4 : vector<9x256xf32>
    %cst_32 = arith.constant dense<0xFF800000> : vector<256xf32>
    %52 = vector.multi_reduction <maximumf>, %51, %cst_32 [0] : vector<9x256xf32> to vector<256xf32>
    %53 = vector.shape_cast %52 : vector<256xf32> to vector<1x256xf32>
    %54 = vector.broadcast %53 : vector<1x256xf32> to vector<9x256xf32>
    %55 = arith.subf %51, %54 : vector<9x256xf32>
    %56 = math.exp %55 : vector<9x256xf32>
    %cst_33 = arith.constant dense<0.000000e+00> : vector<256xf32>
    %57 = vector.multi_reduction <add>, %56, %cst_33 [0] : vector<9x256xf32> to vector<256xf32>
    %58 = vector.shape_cast %57 : vector<256xf32> to vector<1x256xf32>
    %59 = tpu.reciprocal %58 {approx = true} : vector<1x256xf32> -> vector<1x256xf32>
    %60 = arith.mulf %56, %4 : vector<9x256xf32>
    %cst_34 = arith.constant 0.000000e+00 : f32
    %61 = vector.broadcast %cst_34 : f32 to vector<16x256xf32>
    %c0_35 = arith.constant 0 : index
    %c0_36 = arith.constant 0 : index
    %c0_37 = arith.constant 0 : index
    %62 = vector.load %arg4[%c0_35, %c0_36, %c0_37] : memref<1x16x290xf32, #tpu.memory_space<vmem>>, vector<1x16x256xf32>
    %63 = vector.shape_cast %62 : vector<1x16x256xf32> to vector<16x256xf32>
    %64 = vector.extract_strided_slice %60 {offsets = [0, 0], sizes = [1, 256], strides = [1, 1]} : vector<9x256xf32> to vector<1x256xf32>
    %65 = vector.broadcast %64 : vector<1x256xf32> to vector<16x256xf32>
    %66 = arith.mulf %65, %63 : vector<16x256xf32>
    %67 = arith.addf %61, %66 : vector<16x256xf32>
    %c0_38 = arith.constant 0 : index
    %c0_39 = arith.constant 0 : index
    %c1_40 = arith.constant 1 : index
    %68 = vector.load %arg4[%c0_38, %c0_39, %c1_40] : memref<1x16x290xf32, #tpu.memory_space<vmem>>, vector<1x16x256xf32>
    %69 = vector.shape_cast %68 : vector<1x16x256xf32> to vector<16x256xf32>
    %70 = vector.extract_strided_slice %60 {offsets = [1, 0], sizes = [1, 256], strides = [1, 1]} : vector<9x256xf32> to vector<1x256xf32>
    %71 = vector.broadcast %70 : vector<1x256xf32> to vector<16x256xf32>
    %72 = arith.mulf %71, %69 : vector<16x256xf32>
    %73 = arith.addf %67, %72 : vector<16x256xf32>
    %c0_41 = arith.constant 0 : index
    %c0_42 = arith.constant 0 : index
    %c2_43 = arith.constant 2 : index
    %74 = vector.load %arg4[%c0_41, %c0_42, %c2_43] : memref<1x16x290xf32, #tpu.memory_space<vmem>>, vector<1x16x256xf32>
    %75 = vector.shape_cast %74 : vector<1x16x256xf32> to vector<16x256xf32>
    %76 = vector.extract_strided_slice %60 {offsets = [2, 0], sizes = [1, 256], strides = [1, 1]} : vector<9x256xf32> to vector<1x256xf32>
    %77 = vector.broadcast %76 : vector<1x256xf32> to vector<16x256xf32>
    %78 = arith.mulf %77, %75 : vector<16x256xf32>
    %79 = arith.addf %73, %78 : vector<16x256xf32>
    %c0_44 = arith.constant 0 : index
    %c0_45 = arith.constant 0 : index
    %c16_46 = arith.constant 16 : index
    %80 = vector.load %arg4[%c0_44, %c0_45, %c16_46] : memref<1x16x290xf32, #tpu.memory_space<vmem>>, vector<1x16x256xf32>
    %81 = vector.shape_cast %80 : vector<1x16x256xf32> to vector<16x256xf32>
    %82 = vector.extract_strided_slice %60 {offsets = [3, 0], sizes = [1, 256], strides = [1, 1]} : vector<9x256xf32> to vector<1x256xf32>
    %83 = vector.broadcast %82 : vector<1x256xf32> to vector<16x256xf32>
    %84 = arith.mulf %83, %81 : vector<16x256xf32>
    %85 = arith.addf %79, %84 : vector<16x256xf32>
    %c0_47 = arith.constant 0 : index
    %c0_48 = arith.constant 0 : index
    %c17_49 = arith.constant 17 : index
    %86 = vector.load %arg4[%c0_47, %c0_48, %c17_49] : memref<1x16x290xf32, #tpu.memory_space<vmem>>, vector<1x16x256xf32>
    %87 = vector.shape_cast %86 : vector<1x16x256xf32> to vector<16x256xf32>
    %88 = vector.extract_strided_slice %60 {offsets = [4, 0], sizes = [1, 256], strides = [1, 1]} : vector<9x256xf32> to vector<1x256xf32>
    %89 = vector.broadcast %88 : vector<1x256xf32> to vector<16x256xf32>
    %90 = arith.mulf %89, %87 : vector<16x256xf32>
    %91 = arith.addf %85, %90 : vector<16x256xf32>
    %c0_50 = arith.constant 0 : index
    %c0_51 = arith.constant 0 : index
    %c18_52 = arith.constant 18 : index
    %92 = vector.load %arg4[%c0_50, %c0_51, %c18_52] : memref<1x16x290xf32, #tpu.memory_space<vmem>>, vector<1x16x256xf32>
    %93 = vector.shape_cast %92 : vector<1x16x256xf32> to vector<16x256xf32>
    %94 = vector.extract_strided_slice %60 {offsets = [5, 0], sizes = [1, 256], strides = [1, 1]} : vector<9x256xf32> to vector<1x256xf32>
    %95 = vector.broadcast %94 : vector<1x256xf32> to vector<16x256xf32>
    %96 = arith.mulf %95, %93 : vector<16x256xf32>
    %97 = arith.addf %91, %96 : vector<16x256xf32>
    %c0_53 = arith.constant 0 : index
    %c0_54 = arith.constant 0 : index
    %c32_55 = arith.constant 32 : index
    %98 = vector.load %arg4[%c0_53, %c0_54, %c32_55] : memref<1x16x290xf32, #tpu.memory_space<vmem>>, vector<1x16x256xf32>
    %99 = vector.shape_cast %98 : vector<1x16x256xf32> to vector<16x256xf32>
    %100 = vector.extract_strided_slice %60 {offsets = [6, 0], sizes = [1, 256], strides = [1, 1]} : vector<9x256xf32> to vector<1x256xf32>
    %101 = vector.broadcast %100 : vector<1x256xf32> to vector<16x256xf32>
    %102 = arith.mulf %101, %99 : vector<16x256xf32>
    %103 = arith.addf %97, %102 : vector<16x256xf32>
    %c0_56 = arith.constant 0 : index
    %c0_57 = arith.constant 0 : index
    %c33_58 = arith.constant 33 : index
    %104 = vector.load %arg4[%c0_56, %c0_57, %c33_58] : memref<1x16x290xf32, #tpu.memory_space<vmem>>, vector<1x16x256xf32>
    %105 = vector.shape_cast %104 : vector<1x16x256xf32> to vector<16x256xf32>
    %106 = vector.extract_strided_slice %60 {offsets = [7, 0], sizes = [1, 256], strides = [1, 1]} : vector<9x256xf32> to vector<1x256xf32>
    %107 = vector.broadcast %106 : vector<1x256xf32> to vector<16x256xf32>
    %108 = arith.mulf %107, %105 : vector<16x256xf32>
    %109 = arith.addf %103, %108 : vector<16x256xf32>
    %c0_59 = arith.constant 0 : index
    %c0_60 = arith.constant 0 : index
    %c34_61 = arith.constant 34 : index
    %110 = vector.load %arg4[%c0_59, %c0_60, %c34_61] : memref<1x16x290xf32, #tpu.memory_space<vmem>>, vector<1x16x256xf32>
    %111 = vector.shape_cast %110 : vector<1x16x256xf32> to vector<16x256xf32>
    %112 = vector.extract_strided_slice %60 {offsets = [8, 0], sizes = [1, 256], strides = [1, 1]} : vector<9x256xf32> to vector<1x256xf32>
    %113 = vector.broadcast %112 : vector<1x256xf32> to vector<16x256xf32>
    %114 = arith.mulf %113, %111 : vector<16x256xf32>
    %115 = arith.addf %109, %114 : vector<16x256xf32>
    %116 = vector.broadcast %59 : vector<1x256xf32> to vector<16x256xf32>
    %117 = arith.mulf %115, %116 : vector<16x256xf32>
    %c0_62 = arith.constant 0 : index
    %c0_63 = arith.constant 0 : index
    %c0_64 = arith.constant 0 : index
    %118 = vector.load %arg6[%c0_62, %c0_63, %c0_64] : memref<1x16x256xf32, #tpu.memory_space<vmem>>, vector<1x16x256xf32>
    %119 = vector.shape_cast %118 : vector<1x16x256xf32> to vector<16x256xf32>
    %120 = vector.shape_cast %117 : vector<16x256xf32> to vector<1x16x256xf32>
    tpu.vector_store %arg6[%c0_62, %c0_63, %c0_64], %120 {strides = array<i32>} : memref<1x16x256xf32, #tpu.memory_space<vmem>>, vector<1x16x256xf32>,
    return
  }
  func.func @transform_0(%arg0: i32, %arg1: i32) -> (i32, i32, i32) {
    %c0_i32 = arith.constant 0 : i32
    %c0_i32_0 = arith.constant 0 : i32
    return %arg0, %arg1, %c0_i32 : i32, i32, i32
  }
  func.func @transform_1(%arg0: i32, %arg1: i32) -> (i32, i32, i32) {
    %c0_i32 = arith.constant 0 : i32
    %c0_i32_0 = arith.constant 0 : i32
    return %arg0, %arg1, %c0_i32 : i32, i32, i32
  }
  func.func @transform_2(%arg0: i32, %arg1: i32) -> (i32, i32, i32) {
    %c0_i32 = arith.constant 0 : i32
    %c0_i32_0 = arith.constant 0 : i32
    return %arg0, %arg1, %c0_i32 : i32, i32, i32
  }
  func.func @transform_3(%arg0: i32, %arg1: i32) -> (i32, i32) {
    %c0_i32 = arith.constant 0 : i32
    %c0_i32_0 = arith.constant 0 : i32
    %c0_i32_1 = arith.constant 0 : i32
    return %c0_i32, %c0_i32_0 : i32, i32
  }
  func.func @transform_4(%arg0: i32, %arg1: i32) -> (i32, i32, i32) {
    %c0_i32 = arith.constant 0 : i32
    %c0_i32_0 = arith.constant 0 : i32
    return %arg0, %arg1, %c0_i32 : i32, i32, i32
  }
}

</mosaic_0001>

<llo_original>
// kernel: dilate_attention.1
$region0: #{dilate_attention.1}
  #allocation0 [shape = 'u32[]', space=smem, size = 0x4, offset = 0x4, fixed_abs, tag = 'smem constant byte address 0x4 - core index']
  #allocation1 [shape = 'u32[72,128]{1,0:T(1,128)}', space=vmem, size = 0x9000, scoped, tag = 'internal scratch']
  %s0 = inlined_call_operand.vmem [shape: f32[2,32,256], index: 0, kind: input, shape index: {}]
  %s1 = inlined_call_operand.vmem [shape: f32[2,32,290], index: 1, kind: input, shape index: {}]
  %s2 = inlined_call_operand.vmem [shape: f32[2,32,290], index: 2, kind: input, shape index: {}]
  %s3 = inlined_call_operand.vmem [shape: f32[9,256], index: 3, kind: input, shape index: {}]
  %s4 = inlined_call_operand.vmem [shape: f32[2,32,256], index: 4, kind: output, shape index: {}]
  %s5 = sld [smem:[#allocation0]]
  $region49: #{dilate_attention.1} parent=0
    _
  %s7 = ssub.s32 1, %s5
  %s8 = scalar_select 0, %s7, %s5
  loop: start=0, step=1, limit=6
  $region2: #{dilate_attention.1} parent=0 // loop_pre_header
    _
  $region3: #{dilate_attention.1} parent=0 // loop_header
    %s10 = sphi 0, %s14
    %p11 = scmp.ge.s32.totalorder %s10, 6
    %s17 = sphi 0, %s29
    %s18 = sphi 0, %s25
    %s19 = sphi 0, %s17
    %s20 = sphi 0, %s18
    %s21 = sphi 0, %s19
    %s22 = sphi 0, %s20
    %s34 = sphi 0, %s36
    %s37 = sphi 0, %s34
    %s38 = sphi 0, %s37
    %s54 = sphi 0, %s38
    %s62 = sphi 0, %s64
    %s65 = sphi 0, %s62
    %s66 = sphi 0, %s65
    %s82 = sphi 0, %s66
    %s90 = sphi 0, %s92
    %s93 = sphi 0, %s90
    %s94 = sphi 0, %s93
    %s110 = sphi 0, %s94
    %s114 = sphi 0, %s114
    %s116 = sphi 0, %s114
    %s117 = sphi 0, %s116
    %s131 = sphi 0, %s117
    %s139 = sphi 0, %s141
    %s142 = sphi 0, %s139
    %s143 = sphi 0, %s142
    %s159 = sphi 0, %s143
  $region4: #{dilate_attention.1} parent=0 // loop_header_branch
    %13 = sbr.rel (%p11) target = $region8
  $region5: #{dilate_attention.1} parent=0 // loop_body
    %s15 = ssub.s32 %s10, 1
    %s16 = ssub.s32 %s10, 2
    %s23 = sadd.s32 1, %s18
    %p24 = scmp.ge.s32.totalorder %s23, 2
    %s25 = scalar_select %p24, 0, %s23
    %s26 = sadd.s32 1, %s17
    %s27 = scalar_select %p24, %s26, %s17
    %p28 = scmp.ge.s32.totalorder %s27, 2
    %s29 = scalar_select %p28, 0, %s27
    %s30 = ssub.s32 %s17, %s29
    %s31 = ssub.s32 %s18, %s25
    %s32 = sor.u32 %s30, %s31
    %p33 = scmp.eq.s32.totalorder %s32, 0
    %s35 = sadd.s32 %s34, 1
    %s36 = scalar_select %p33, %s34, %s35
    %p39 = pneg %p33
    %p40 = scmp.eq.s32.totalorder %s10, 3
    %p41 = por %p39, %p40
    %p42 = scmp.ne.s32.totalorder %s34, %s37
    %p43 = scmp.eq.s32.totalorder %s10, 0
    %p44 = por %p42, %p43
    %p45 = scmp.ne.s32.totalorder %s34, %s37
    %p46 = scmp.eq.s32.totalorder %s15, 3
    %p47 = por %p45, %p46
    %p48 = scmp.ne.s32.totalorder %s37, %s38
    %p49 = scmp.eq.s32.totalorder %s15, 0
    %p50 = por %p48, %p49
    %p51 = scmp.ne.s32.totalorder %s37, %s38
    %p52 = scmp.eq.s32.totalorder %s16, 3
    %p53 = por %p51, %p52
    %p55 = scmp.ne.s32.totalorder %s38, %s54
    %p56 = scmp.eq.s32.totalorder %s16, 0
    %p57 = por %p55, %p56
    %s58 = ssub.s32 %s17, %s29
    %s59 = ssub.s32 %s18, %s25
    %s60 = sor.u32 %s58, %s59
    %p61 = scmp.eq.s32.totalorder %s60, 0
    %s63 = sadd.s32 %s62, 1
    %s64 = scalar_select %p61, %s62, %s63
    %p67 = pneg %p61
    %p68 = scmp.eq.s32.totalorder %s10, 3
    %p69 = por %p67, %p68
    %p70 = scmp.ne.s32.totalorder %s62, %s65
    %p71 = scmp.eq.s32.totalorder %s10, 0
    %p72 = por %p70, %p71
    %p73 = scmp.ne.s32.totalorder %s62, %s65
    %p74 = scmp.eq.s32.totalorder %s15, 3
    %p75 = por %p73, %p74
    %p76 = scmp.ne.s32.totalorder %s65, %s66
    %p77 = scmp.eq.s32.totalorder %s15, 0
    %p78 = por %p76, %p77
    %p79 = scmp.ne.s32.totalorder %s65, %s66
    %p80 = scmp.eq.s32.totalorder %s16, 3
    %p81 = por %p79, %p80
    %p83 = scmp.ne.s32.totalorder %s66, %s82
    %p84 = scmp.eq.s32.totalorder %s16, 0
    %p85 = por %p83, %p84
    %s86 = ssub.s32 %s17, %s29
    %s87 = ssub.s32 %s18, %s25
    %s88 = sor.u32 %s86, %s87
    %p89 = scmp.eq.s32.totalorder %s88, 0
    %s91 = sadd.s32 %s90, 1
    %s92 = scalar_select %p89, %s90, %s91
    %p95 = pneg %p89
    %p96 = scmp.eq.s32.totalorder %s10, 3
    %p97 = por %p95, %p96
    %p98 = scmp.ne.s32.totalorder %s90, %s93
    %p99 = scmp.eq.s32.totalorder %s10, 0
    %p100 = por %p98, %p99
    %p101 = scmp.ne.s32.totalorder %s90, %s93
    %p102 = scmp.eq.s32.totalorder %s15, 3
    %p103 = por %p101, %p102
    %p104 = scmp.ne.s32.totalorder %s93, %s94
    %p105 = scmp.eq.s32.totalorder %s15, 0
    %p106 = por %p104, %p105
    %p107 = scmp.ne.s32.totalorder %s93, %s94
    %p108 = scmp.eq.s32.totalorder %s16, 3
    %p109 = por %p107, %p108
    %p111 = scmp.ne.s32.totalorder %s94, %s110
    %p112 = scmp.eq.s32.totalorder %s16, 0
    %p113 = por %p111, %p112
    %s115 = sadd.s32 %s114, 1
    %p118 = scmp.eq.s32.totalorder %s10, 3
    %p119 = scmp.ne.s32.totalorder %s114, %s116
    %p120 = scmp.eq.s32.totalorder %s10, 0
    %p121 = por %p119, %p120
    %p122 = scmp.ne.s32.totalorder %s114, %s116
    %p123 = scmp.eq.s32.totalorder %s15, 3
    %p124 = por %p122, %p123
    %p125 = scmp.ne.s32.totalorder %s116, %s117
    %p126 = scmp.eq.s32.totalorder %s15, 0
    %p127 = por %p125, %p126
    %p128 = scmp.ne.s32.totalorder %s116, %s117
    %p129 = scmp.eq.s32.totalorder %s16, 3
    %p130 = por %p128, %p129
    %p132 = scmp.ne.s32.totalorder %s117, %s131
    %p133 = scmp.eq.s32.totalorder %s16, 0
    %p134 = por %p132, %p133
    %s135 = ssub.s32 %s17, %s29
    %s136 = ssub.s32 %s18, %s25
    %s137 = sor.u32 %s135, %s136
    %p138 = scmp.eq.s32.totalorder %s137, 0
    %s140 = sadd.s32 %s139, 1
    %s141 = scalar_select %p138, %s139, %s140
    %p144 = pneg %p138
    %p145 = scmp.eq.s32.totalorder %s10, 3
    %p146 = por %p144, %p145
    %p147 = scmp.ne.s32.totalorder %s139, %s142
    %p148 = scmp.eq.s32.totalorder %s10, 0
    %p149 = por %p147, %p148
    %p150 = scmp.ne.s32.totalorder %s139, %s142
    %p151 = scmp.eq.s32.totalorder %s15, 3
    %p152 = por %p150, %p151
    %p153 = scmp.ne.s32.totalorder %s142, %s143
    %p154 = scmp.eq.s32.totalorder %s15, 0
    %p155 = por %p153, %p154
    %p156 = scmp.ne.s32.totalorder %s142, %s143
    %p157 = scmp.eq.s32.totalorder %s16, 3
    %p158 = por %p156, %p157
    %p160 = scmp.ne.s32.totalorder %s143, %s159
    %p161 = scmp.eq.s32.totalorder %s16, 0
    %p162 = por %p160, %p161
    %p163 = scmp.le.s32.totalorder 1, %s10
    %p164 = scmp.lt.s32.totalorder %s10, 5
    %p165 = pnand %p163, %p164
    %p166 = pneg %p165
    // Predicated region
    $region9: #{dilate_attention.1} parent=5 // pred_check
      _
    $region10: #{dilate_attention.1} parent=5 // pred_check_branch
      %168 = sbr.rel (%p165) target = $region12
    $region11: #{dilate_attention.1} parent=5 // pred_region
      %s169 = ssub.s32 %s10, 1
      // Predicated region
      $region13: #{dilate_attention.1} parent=11 // pred_check
        %p170 = pneg %p127
      $region14: #{dilate_attention.1} parent=11 // pred_check_branch
        %172 = sbr.rel (%p170) target = $region16
      $region15: #{dilate_attention.1} parent=11 // pred_region
        _
      $region16: #{dilate_attention.1} parent=11 // pred_fallthru
        _
    $region12: #{dilate_attention.1} parent=5 // pred_fallthru
      _
    %p173 = scmp.lt.s32.totalorder %s10, 4
    // Predicated region
    $region17: #{dilate_attention.1} parent=5 // pred_check
      %p174 = pneg %p173
    $region18: #{dilate_attention.1} parent=5 // pred_check_branch
      %176 = sbr.rel (%p174) target = $region20
    $region19: #{dilate_attention.1} parent=5 // pred_region
      // Predicated region
      $region21: #{dilate_attention.1} parent=19 // pred_check
        %p177 = pneg %p44
      $region22: #{dilate_attention.1} parent=19 // pred_check_branch
        %179 = sbr.rel (%p177) target = $region24
      $region23: #{dilate_attention.1} parent=19 // pred_region
        %s180 = smul.u32 2, %s18
        %p181 = scmp.lt.s32.totalorder %s17, 1
        %s182 = scalar_select %p181, %s17, 1
        %p183 = scmp.lt.s32.totalorder %s180, 3
        %s184 = scalar_select %p183, %s180, 3
        %s185 = smul.addr %s184, 2
        %s186 = smul.addr %s182, 8
        %s187 = sadd.s32 %s185, %s186
        %s188 = smul.addr %s187, 8
        %s189 = scalar_lea.vmem %s0, %s188
        %s190 = smul.u32 2, %s18
      $region24: #{dilate_attention.1} parent=19 // pred_fallthru
        _
      // Predicated region
      $region25: #{dilate_attention.1} parent=19 // pred_check
        %p191 = pneg %p72
      $region26: #{dilate_attention.1} parent=19 // pred_check_branch
        %193 = sbr.rel (%p191) target = $region28
      $region27: #{dilate_attention.1} parent=19 // pred_region
        %s194 = smul.u32 2, %s18
        %p195 = scmp.lt.s32.totalorder %s17, 1
        %s196 = scalar_select %p195, %s17, 1
        %p197 = scmp.lt.s32.totalorder %s194, 3
        %s198 = scalar_select %p197, %s194, 3
        %s199 = smul.addr %s198, 3
        %s200 = smul.addr %s196, 12
        %s201 = sadd.s32 %s199, %s200
        %s202 = smul.addr %s201, 8
        %s203 = scalar_lea.vmem %s1, %s202
        %s204 = smul.u32 2, %s18
      $region28: #{dilate_attention.1} parent=19 // pred_fallthru
        _
      // Predicated region
      $region29: #{dilate_attention.1} parent=19 // pred_check
        %p205 = pneg %p100
      $region30: #{dilate_attention.1} parent=19 // pred_check_branch
        %207 = sbr.rel (%p205) target = $region32
      $region31: #{dilate_attention.1} parent=19 // pred_region
        %s208 = smul.u32 2, %s18
        %p209 = scmp.lt.s32.totalorder %s17, 1
        %s210 = scalar_select %p209, %s17, 1
        %p211 = scmp.lt.s32.totalorder %s208, 3
        %s212 = scalar_select %p211, %s208, 3
        %s213 = smul.addr %s212, 3
        %s214 = smul.addr %s210, 12
        %s215 = sadd.s32 %s213, %s214
        %s216 = smul.addr %s215, 8
        %s217 = scalar_lea.vmem %s2, %s216
        %s218 = smul.u32 2, %s18
      $region32: #{dilate_attention.1} parent=19 // pred_fallthru
        _
    $region20: #{dilate_attention.1} parent=5 // pred_fallthru
      _
    %p219 = scmp.le.s32.totalorder 1, %s10
    %p220 = scmp.lt.s32.totalorder %s10, 5
    %p221 = pnand %p219, %p220
    %p222 = pneg %p221
    // Predicated region
    $region33: #{dilate_attention.1} parent=5 // pred_check
      _
    $region34: #{dilate_attention.1} parent=5 // pred_check_branch
      %224 = sbr.rel (%p221) target = $region36
    $region35: #{dilate_attention.1} parent=5 // pred_region
      %s225 = ssub.s32 %s10, 1
      %s226 = smul.u32 2, %s20
      %p227 = scmp.lt.s32.totalorder %s19, 1
      %s228 = scalar_select %p227, %s19, 1
      %p229 = scmp.lt.s32.totalorder %s226, 3
      %s230 = scalar_select %p229, %s226, 3
      %s231 = smul.addr %s230, 2
      %s232 = smul.addr %s228, 8
      %s233 = sadd.s32 %s231, %s232
      %s234 = smul.addr %s233, 8
      %s235 = scalar_lea.vmem %s0, %s234
      %p236 = pneg %p50
      %p237 = pneg %p47
      %s238 = smul.u32 2, %s20
      %p239 = scmp.lt.s32.totalorder %s19, 1
      %s240 = scalar_select %p239, %s19, 1
      %p241 = scmp.lt.s32.totalorder %s238, 3
      %s242 = scalar_select %p241, %s238, 3
      %s243 = smul.addr %s242, 3
      %s244 = smul.addr %s240, 12
      %s245 = sadd.s32 %s243, %s244
      %s246 = smul.addr %s245, 8
      %s247 = scalar_lea.vmem %s1, %s246
      %p248 = pneg %p78
      %p249 = pneg %p75
      %s250 = smul.u32 2, %s20
      %p251 = scmp.lt.s32.totalorder %s19, 1
      %s252 = scalar_select %p251, %s19, 1
      %p253 = scmp.lt.s32.totalorder %s250, 3
      %s254 = scalar_select %p253, %s250, 3
      %s255 = smul.addr %s254, 3
      %s256 = smul.addr %s252, 12
      %s257 = sadd.s32 %s255, %s256
      %s258 = smul.addr %s257, 8
      %s259 = scalar_lea.vmem %s2, %s258
      %p260 = pneg %p106
      %p261 = pneg %p103
      %p262 = pneg %p127
      %p263 = pneg %p124
      %p264 = pneg %p155
      %p265 = pneg %p152
      %s266 = smul.u32 2, %s20
      %p267 = scmp.lt.s32.totalorder %s19, 1
      %s268 = scalar_select %p267, %s19, 1
      %p269 = scmp.lt.s32.totalorder %s266, 3
      %s270 = scalar_select %p269, %s266, 3
      %s271 = smul.addr %s270, 2
      %s272 = smul.addr %s268, 8
      %s273 = sadd.s32 %s271, %s272
      %s274 = smul.addr %s273, 8
      %s275 = scalar_lea.vmem %s4, %s274
      %s276 = smul.u32 2, %s20
      %p277 = scmp.lt.s32.totalorder %s19, 1
      %s278 = scalar_select %p277, %s19, 1
      %p279 = scmp.lt.s32.totalorder %s276, 3
      %s280 = scalar_select %p279, %s276, 3
      %s281 = smul.addr %s280, 2
      %s282 = smul.addr %s278, 8
      %s283 = sadd.s32 %s281, %s282
      %s284 = smul.addr %s283, 8
      %s285 = scalar_lea.vmem %s0, %s284
      %s286 = smul.u32 2, %s20
      %s287 = smul.u32 2, %s20
      %p288 = scmp.lt.s32.totalorder %s19, 1
      %s289 = scalar_select %p288, %s19, 1
      %p290 = scmp.lt.s32.totalorder %s287, 3
      %s291 = scalar_select %p290, %s287, 3
      %s292 = smul.addr %s291, 3
      %s293 = smul.addr %s289, 12
      %s294 = sadd.s32 %s292, %s293
      %s295 = smul.addr %s294, 8
      %s296 = scalar_lea.vmem %s1, %s295
      %s297 = smul.u32 2, %s20
      %s298 = smul.u32 2, %s20
      %p299 = scmp.lt.s32.totalorder %s19, 1
      %s300 = scalar_select %p299, %s19, 1
      %p301 = scmp.lt.s32.totalorder %s298, 3
      %s302 = scalar_select %p301, %s298, 3
      %s303 = smul.addr %s302, 3
      %s304 = smul.addr %s300, 12
      %s305 = sadd.s32 %s303, %s304
      %s306 = smul.addr %s305, 8
      %s307 = scalar_lea.vmem %s2, %s306
      %s308 = smul.u32 2, %s20
      %s309 = smul.u32 2, %s20
      %p310 = scmp.lt.s32.totalorder %s19, 1
      %s311 = scalar_select %p310, %s19, 1
      %p312 = scmp.lt.s32.totalorder %s309, 3
      %s313 = scalar_select %p312, %s309, 3
      %s314 = smul.addr %s313, 2
      %s315 = smul.addr %s311, 8
      %s316 = sadd.s32 %s314, %s315
      %s317 = smul.addr %s316, 8
      %s318 = scalar_lea.vmem %s4, %s317
      %s319 = smul.u32 2, %s20
      %v320 = vld [vmem:[%s285] sm:$0xff]
      %v321 = vld [vmem:[%s285 + $0x8] sm:$0xff]
      %v322 = vld [vmem:[%s285 + $0x10] sm:$0xff]
      %v323 = vld [vmem:[%s285 + $0x18] sm:$0xff]
      %v324 = vmul.f32 %v320, 0.25
      %v325 = vmul.f32 %v321, 0.25
      %v326 = vmul.f32 %v322, 0.25
      %v327 = vmul.f32 %v323, 0.25
      %v328 = vld [vmem:[%s3] sm:$0xff]
      %v329 = vld [vmem:[%s3 + $0x8] sm:$0xff]
      %v330 = vld [vmem:[%s3 + $0x10] sm:$0x1]
      %v331 = vld [vmem:[%s3 + $0x18] sm:$0x1]
      %v332 = vld [vmem:[%s296] sm:$0xff]
      %v333 = vld [vmem:[%s296 + $0x8] sm:$0xff]
      %v334 = vld [vmem:[%s296 + $0x18] sm:$0xff]
      %v335 = vld [vmem:[%s296 + $0x20] sm:$0xff]
      %v336 = vmul.f32 %v324, %v332
      %v337 = vmul.f32 %v325, %v333
      %v338 = vmul.f32 %v326, %v334
      %v339 = vmul.f32 %v327, %v335
      %v340 = vadd.f32 %v336, %v338
      %v341 = vrot.slane %v340, 4
      %v342 = vadd.f32 %v340, %v341
      %v343 = vrot.slane %v342, 2
      %v344 = vadd.f32 %v342, %v343
      %v345 = vrot.slane %v344, 1
      %v346 = vadd.f32 %v344, %v345
      %v347 = vadd.f32 %v337, %v339
      %v348 = vrot.slane %v347, 4
      %v349 = vadd.f32 %v347, %v348
      %v350 = vrot.slane %v349, 2
      %v351 = vadd.f32 %v349, %v350
      %v352 = vrot.slane %v351, 1
      %v353 = vadd.f32 %v351, %v352
      %v354 = vld [vmem:[%s296 + $0x10] sm:$0xff]
      %v355 = vld [vmem:[%s296 + $0x28] sm:$0xff]
      %362 = vrot.lane.b32.xlu0 %v332, 127
      %v363 = vpop.permute.xlu0 %362
      %364 = vrot.lane.b32.xlu0 %v333, 127
      %v365 = vpop.permute.xlu0 %364
      %366 = vrot.lane.b32.xlu0 %v354, 127
      %v367 = vpop.permute.xlu0 %366
      %368 = vrot.lane.b32.xlu0 %v334, 127
      %v369 = vpop.permute.xlu0 %368
      %370 = vrot.lane.b32.xlu0 %v335, 127
      %v371 = vpop.permute.xlu0 %370
      %372 = vrot.lane.b32.xlu0 %v355, 127
      %v373 = vpop.permute.xlu0 %372
      %vm374 = vcmask 1039360
      %v375 = vsel %vm374, %v363, %v365
      %v376 = vsel %vm374, %v365, %v367
      %v377 = vsel %vm374, %v369, %v371
      %v378 = vsel %vm374, %v371, %v373
      %v383 = vmul.f32 %v324, %v375
      %v384 = vmul.f32 %v325, %v376
      %v385 = vmul.f32 %v326, %v377
      %v386 = vmul.f32 %v327, %v378
      %v387 = vadd.f32 %v383, %v385
      %v388 = vrot.slane %v387, 4
      %v389 = vadd.f32 %v387, %v388
      %v390 = vrot.slane %v389, 2
      %v391 = vadd.f32 %v389, %v390
      %v392 = vrot.slane %v391, 1
      %v393 = vadd.f32 %v391, %v392
      %v394 = vadd.f32 %v384, %v386
      %v395 = vrot.slane %v394, 4
      %v396 = vadd.f32 %v394, %v395
      %v397 = vrot.slane %v396, 2
      %v398 = vadd.f32 %v396, %v397
      %v399 = vrot.slane %v398, 1
      %v400 = vadd.f32 %v398, %v399
      %401 = vrot.lane.b32.xlu0 %v332, 126
      %v402 = vpop.permute.xlu0 %401
      %403 = vrot.lane.b32.xlu0 %v333, 126
      %v404 = vpop.permute.xlu0 %403
      %405 = vrot.lane.b32.xlu0 %v354, 126
      %v406 = vpop.permute.xlu0 %405
      %407 = vrot.lane.b32.xlu0 %v334, 126
      %v408 = vpop.permute.xlu0 %407
      %409 = vrot.lane.b32.xlu0 %v335, 126
      %v410 = vpop.permute.xlu0 %409
      %411 = vrot.lane.b32.xlu0 %v355, 126
      %v412 = vpop.permute.xlu0 %411
      %vm413 = vcmask 1031168
      %v414 = vsel %vm413, %v402, %v404
      %v415 = vsel %vm413, %v404, %v406
      %v416 = vsel %vm413, %v408, %v410
      %v417 = vsel %vm413, %v410, %v412
      %v422 = vmul.f32 %v324, %v414
      %v423 = vmul.f32 %v325, %v415
      %v424 = vmul.f32 %v326, %v416
      %v425 = vmul.f32 %v327, %v417
      %v426 = vadd.f32 %v422, %v424
      %v427 = vrot.slane %v426, 4
      %v428 = vadd.f32 %v426, %v427
      %v429 = vrot.slane %v428, 2
      %v430 = vadd.f32 %v428, %v429
      %v431 = vrot.slane %v430, 1
      %v432 = vadd.f32 %v430, %v431
      %v433 = vadd.f32 %v423, %v425
      %v434 = vrot.slane %v433, 4
      %v435 = vadd.f32 %v433, %v434
      %v436 = vrot.slane %v435, 2
      %v437 = vadd.f32 %v435, %v436
      %v438 = vrot.slane %v437, 1
      %v439 = vadd.f32 %v437, %v438
      %440 = vrot.lane.b32.xlu0 %v332, 112
      %v441 = vpop.permute.xlu0 %440
      %442 = vrot.lane.b32.xlu0 %v333, 112
      %v443 = vpop.permute.xlu0 %442
      %444 = vrot.lane.b32.xlu0 %v354, 112
      %v445 = vpop.permute.xlu0 %444
      %446 = vrot.lane.b32.xlu0 %v334, 112
      %v447 = vpop.permute.xlu0 %446
      %448 = vrot.lane.b32.xlu0 %v335, 112
      %v449 = vpop.permute.xlu0 %448
      %450 = vrot.lane.b32.xlu0 %v355, 112
      %v451 = vpop.permute.xlu0 %450
      %vm452 = vcmask 916480
      %v453 = vsel %vm452, %v441, %v443
      %v454 = vsel %vm452, %v443, %v445
      %v455 = vsel %vm452, %v447, %v449
      %v456 = vsel %vm452, %v449, %v451
      %v461 = vmul.f32 %v324, %v453
      %v462 = vmul.f32 %v325, %v454
      %v463 = vmul.f32 %v326, %v455
      %v464 = vmul.f32 %v327, %v456
      %v465 = vadd.f32 %v461, %v463
      %v466 = vrot.slane %v465, 4
      %v467 = vadd.f32 %v465, %v466
      %v468 = vrot.slane %v467, 2
      %v469 = vadd.f32 %v467, %v468
      %v470 = vrot.slane %v469, 1
      %v471 = vadd.f32 %v469, %v470
      %v472 = vadd.f32 %v462, %v464
      %v473 = vrot.slane %v472, 4
      %v474 = vadd.f32 %v472, %v473
      %v475 = vrot.slane %v474, 2
      %v476 = vadd.f32 %v474, %v475
      %v477 = vrot.slane %v476, 1
      %v478 = vadd.f32 %v476, %v477
      %479 = vrot.lane.b32.xlu0 %v332, 111
      %v480 = vpop.permute.xlu0 %479
      %481 = vrot.lane.b32.xlu0 %v333, 111
      %v482 = vpop.permute.xlu0 %481
      %483 = vrot.lane.b32.xlu0 %v354, 111
      %v484 = vpop.permute.xlu0 %483
      %485 = vrot.lane.b32.xlu0 %v334, 111
      %v486 = vpop.permute.xlu0 %485
      %487 = vrot.lane.b32.xlu0 %v335, 111
      %v488 = vpop.permute.xlu0 %487
      %489 = vrot.lane.b32.xlu0 %v355, 111
      %v490 = vpop.permute.xlu0 %489
      %vm491 = vcmask 908288
      %v492 = vsel %vm491, %v480, %v482
      %v493 = vsel %vm491, %v482, %v484
      %v494 = vsel %vm491, %v486, %v488
      %v495 = vsel %vm491, %v488, %v490
      %v500 = vmul.f32 %v324, %v492
      %v501 = vmul.f32 %v325, %v493
      %v502 = vmul.f32 %v326, %v494
      %v503 = vmul.f32 %v327, %v495
      %v504 = vadd.f32 %v500, %v502
      %v505 = vrot.slane %v504, 4
      %v506 = vadd.f32 %v504, %v505
      %v507 = vrot.slane %v506, 2
      %v508 = vadd.f32 %v506, %v507
      %v509 = vrot.slane %v508, 1
      %v510 = vadd.f32 %v508, %v509
      %v511 = vadd.f32 %v501, %v503
      %v512 = vrot.slane %v511, 4
      %v513 = vadd.f32 %v511, %v512
      %v514 = vrot.slane %v513, 2
      %v515 = vadd.f32 %v513, %v514
      %v516 = vrot.slane %v515, 1
      %v517 = vadd.f32 %v515, %v516
      %518 = vrot.lane.b32.xlu0 %v332, 110
      %v519 = vpop.permute.xlu0 %518
      %520 = vrot.lane.b32.xlu0 %v333, 110
      %v521 = vpop.permute.xlu0 %520
      %522 = vrot.lane.b32.xlu0 %v354, 110
      %v523 = vpop.permute.xlu0 %522
      %524 = vrot.lane.b32.xlu0 %v334, 110
      %v525 = vpop.permute.xlu0 %524
      %526 = vrot.lane.b32.xlu0 %v335, 110
      %v527 = vpop.permute.xlu0 %526
      %528 = vrot.lane.b32.xlu0 %v355, 110
      %v529 = vpop.permute.xlu0 %528
      %vm530 = vcmask 900096
      %v531 = vsel %vm530, %v519, %v521
      %v532 = vsel %vm530, %v521, %v523
      %v533 = vsel %vm530, %v525, %v527
      %v534 = vsel %vm530, %v527, %v529
      %v539 = vmul.f32 %v324, %v531
      %v540 = vmul.f32 %v325, %v532
      %v541 = vmul.f32 %v326, %v533
      %v542 = vmul.f32 %v327, %v534
      %v543 = vadd.f32 %v539, %v541
      %v544 = vrot.slane %v543, 4
      %v545 = vadd.f32 %v543, %v544
      %v546 = vrot.slane %v545, 2
      %v547 = vadd.f32 %v545, %v546
      %v548 = vrot.slane %v547, 1
      %v549 = vadd.f32 %v547, %v548
      %v550 = vadd.f32 %v540, %v542
      %v551 = vrot.slane %v550, 4
      %v552 = vadd.f32 %v550, %v551
      %v553 = vrot.slane %v552, 2
      %v554 = vadd.f32 %v552, %v553
      %v555 = vrot.slane %v554, 1
      %v556 = vadd.f32 %v554, %v555
      %557 = vrot.lane.b32.xlu0 %v332, 96
      %v558 = vpop.permute.xlu0 %557
      %559 = vrot.lane.b32.xlu0 %v333, 96
      %v560 = vpop.permute.xlu0 %559
      %561 = vrot.lane.b32.xlu0 %v354, 96
      %v562 = vpop.permute.xlu0 %561
      %563 = vrot.lane.b32.xlu0 %v334, 96
      %v564 = vpop.permute.xlu0 %563
      %565 = vrot.lane.b32.xlu0 %v335, 96
      %v566 = vpop.permute.xlu0 %565
      %567 = vrot.lane.b32.xlu0 %v355, 96
      %v568 = vpop.permute.xlu0 %567
      %vm569 = vcmask 785408
      %v570 = vsel %vm569, %v558, %v560
      %v571 = vsel %vm569, %v560, %v562
      %v572 = vsel %vm569, %v564, %v566
      %v573 = vsel %vm569, %v566, %v568
      %v578 = vmul.f32 %v324, %v570
      %v579 = vmul.f32 %v325, %v571
      %v580 = vmul.f32 %v326, %v572
      %v581 = vmul.f32 %v327, %v573
      %v582 = vadd.f32 %v578, %v580
      %v583 = vrot.slane %v582, 4
      %v584 = vadd.f32 %v582, %v583
      %v585 = vrot.slane %v584, 2
      %v586 = vadd.f32 %v584, %v585
      %v587 = vrot.slane %v586, 1
      %v588 = vadd.f32 %v586, %v587
      %v589 = vadd.f32 %v579, %v581
      %v590 = vrot.slane %v589, 4
      %v591 = vadd.f32 %v589, %v590
      %v592 = vrot.slane %v591, 2
      %v593 = vadd.f32 %v591, %v592
      %v594 = vrot.slane %v593, 1
      %v595 = vadd.f32 %v593, %v594
      %596 = vrot.lane.b32.xlu0 %v332, 95
      %v597 = vpop.permute.xlu0 %596
      %598 = vrot.lane.b32.xlu0 %v333, 95
      %v599 = vpop.permute.xlu0 %598
      %600 = vrot.lane.b32.xlu0 %v354, 95
      %v601 = vpop.permute.xlu0 %600
      %602 = vrot.lane.b32.xlu0 %v334, 95
      %v603 = vpop.permute.xlu0 %602
      %604 = vrot.lane.b32.xlu0 %v335, 95
      %v605 = vpop.permute.xlu0 %604
      %606 = vrot.lane.b32.xlu0 %v355, 95
      %v607 = vpop.permute.xlu0 %606
      %vm608 = vcmask 777216
      %v609 = vsel %vm608, %v597, %v599
      %v610 = vsel %vm608, %v599, %v601
      %v611 = vsel %vm608, %v603, %v605
      %v612 = vsel %vm608, %v605, %v607
      %v617 = vmul.f32 %v324, %v609
      %v618 = vmul.f32 %v325, %v610
      %v619 = vmul.f32 %v326, %v611
      %v620 = vmul.f32 %v327, %v612
      %v621 = vadd.f32 %v617, %v619
      %v622 = vrot.slane %v621, 4
      %v623 = vadd.f32 %v621, %v622
      %v624 = vrot.slane %v623, 2
      %v625 = vadd.f32 %v623, %v624
      %v626 = vrot.slane %v625, 1
      %v627 = vadd.f32 %v625, %v626
      %v628 = vadd.f32 %v618, %v620
      %v629 = vrot.slane %v628, 4
      %v630 = vadd.f32 %v628, %v629
      %v631 = vrot.slane %v630, 2
      %v632 = vadd.f32 %v630, %v631
      %v633 = vrot.slane %v632, 1
      %v634 = vadd.f32 %v632, %v633
      %635 = vrot.lane.b32.xlu0 %v332, 94
      %v636 = vpop.permute.xlu0 %635
      %637 = vrot.lane.b32.xlu0 %v333, 94
      %v638 = vpop.permute.xlu0 %637
      %639 = vrot.lane.b32.xlu0 %v354, 94
      %v640 = vpop.permute.xlu0 %639
      %641 = vrot.lane.b32.xlu0 %v334, 94
      %v642 = vpop.permute.xlu0 %641
      %643 = vrot.lane.b32.xlu0 %v335, 94
      %v644 = vpop.permute.xlu0 %643
      %645 = vrot.lane.b32.xlu0 %v355, 94
      %v646 = vpop.permute.xlu0 %645
      %vm647 = vcmask 769024
      %v648 = vsel %vm647, %v636, %v638
      %v649 = vsel %vm647, %v638, %v640
      %v650 = vsel %vm647, %v642, %v644
      %v651 = vsel %vm647, %v644, %v646
      %v656 = vmul.f32 %v324, %v648
      %v657 = vmul.f32 %v325, %v649
      %v658 = vmul.f32 %v326, %v650
      %v659 = vmul.f32 %v327, %v651
      %v660 = vadd.f32 %v656, %v658
      %v661 = vrot.slane %v660, 4
      %v662 = vadd.f32 %v660, %v661
      %v663 = vrot.slane %v662, 2
      %v664 = vadd.f32 %v662, %v663
      %v665 = vrot.slane %v664, 1
      %v666 = vadd.f32 %v664, %v665
      %v667 = vadd.f32 %v657, %v659
      %v668 = vrot.slane %v667, 4
      %v669 = vadd.f32 %v667, %v668
      %v670 = vrot.slane %v669, 2
      %v671 = vadd.f32 %v669, %v670
      %v672 = vrot.slane %v671, 1
      %v673 = vadd.f32 %v671, %v672
      %vm674 = vcmask 1040384
      %v675 = vsel %vm674, %v346, %v393
      %v676 = vsel %vm674, %v353, %v400
      %vm677 = vcmask 1041408
      %v678 = vsel %vm677, %v675, %v432
      %v679 = vsel %vm677, %v676, %v439
      %vm680 = vcmask 1042432
      %v681 = vsel %vm680, %v678, %v471
      %v682 = vsel %vm680, %v679, %v478
      %vm683 = vcmask 1043456
      %v684 = vsel %vm683, %v681, %v510
      %v685 = vsel %vm683, %v682, %v517
      %vm686 = vcmask 1044480
      %v687 = vsel %vm686, %v684, %v549
      %v688 = vsel %vm686, %v685, %v556
      %vm689 = vcmask 1045504
      %v690 = vsel %vm689, %v687, %v588
      %v691 = vsel %vm689, %v688, %v595
      %vm692 = vcmask 1046528
      %v693 = vsel %vm692, %v690, %v627
      %v694 = vsel %vm692, %v691, %v634
      %v695 = vmul.f32 %v693, %v328
      %v696 = vmul.f32 %v694, %v329
      %v697 = vmul.f32 %v666, %v330
      %v698 = vmul.f32 %v673, %v331
      %v699 = vsel %vm674, %v697, -inf
      %v700 = vmax.f32 %v695, %v699
      %v701 = vrot.slane %v700, 4
      %v702 = vmax.f32 %v700, %v701
      %v703 = vrot.slane %v702, 2
      %v704 = vmax.f32 %v702, %v703
      %v705 = vrot.slane %v704, 1
      %v706 = vmax.f32 %v704, %v705
      %v707 = vsel %vm674, %v698, -inf
      %v708 = vmax.f32 %v696, %v707
      %v709 = vrot.slane %v708, 4
      %v710 = vmax.f32 %v708, %v709
      %v711 = vrot.slane %v710, 2
      %v712 = vmax.f32 %v710, %v711
      %v713 = vrot.slane %v712, 1
      %v714 = vmax.f32 %v712, %v713
      %v715 = vsub.f32 %v695, %v706
      %v716 = vsub.f32 %v696, %v714
      %v717 = vsub.f32 %v697, %v706
      %v718 = vsub.f32 %v698, %v714
      %v719 = vmul.f32 %v715, 1.442695
      %v720 = vpow.pop %v719
      %v721 = vmul.f32 %v716, 1.442695
      %v722 = vpow.pop %v721
      %v723 = vmul.f32 %v717, 1.442695
      %v724 = vpow.pop %v723
      %v725 = vmul.f32 %v718, 1.442695
      %v726 = vpow.pop %v725
      %v727 = vsel %vm674, %v724, 0.0
      %v728 = vadd.f32 %v720, %v727
      %v729 = vrot.slane %v728, 4
      %v730 = vadd.f32 %v728, %v729
      %v731 = vrot.slane %v730, 2
      %v732 = vadd.f32 %v730, %v731
      %v733 = vrot.slane %v732, 1
      %v734 = vadd.f32 %v732, %v733
      %v735 = vsel %vm674, %v726, 0.0
      %v736 = vadd.f32 %v722, %v735
      %v737 = vrot.slane %v736, 4
      %v738 = vadd.f32 %v736, %v737
      %v739 = vrot.slane %v738, 2
      %v740 = vadd.f32 %v738, %v739
      %v741 = vrot.slane %v740, 1
      %v742 = vadd.f32 %v740, %v741
      %v743 = vrcp.pop %v734
      %v744 = vrcp.pop %v742
      %v745 = vmul.f32 %v720, %v328
      %v746 = vmul.f32 %v722, %v329
      %v747 = vmul.f32 %v724, %v330
      %v748 = vmul.f32 %v726, %v331
      %v749 = vld [vmem:[%s307] sm:$0xff]
      %v750 = vld [vmem:[%s307 + $0x8] sm:$0xff]
      %v751 = vld [vmem:[%s307 + $0x18] sm:$0xff]
      %v752 = vld [vmem:[%s307 + $0x20] sm:$0xff]
      %v753 = vperm.slane %v745, 0
      %v754 = vperm.slane %v746, 0
      %v755 = vmul.f32 %v753, %v749
      %v756 = vmul.f32 %v754, %v750
      %v757 = vmul.f32 %v753, %v751
      %v758 = vmul.f32 %v754, %v752
      %v759 = vadd.f32 %v755, 0.0
      %v760 = vadd.f32 %v756, 0.0
      %v761 = vadd.f32 %v757, 0.0
      %v762 = vadd.f32 %v758, 0.0
      %v763 = vld [vmem:[%s307 + $0x10] sm:$0xff]
      %v764 = vld [vmem:[%s307 + $0x28] sm:$0xff]
      %v765 = vperm.slane %v745, 1
      %v766 = vperm.slane %v746, 1
      %773 = vrot.lane.b32.xlu0 %v749, 127
      %v774 = vpop.permute.xlu0 %773
      %775 = vrot.lane.b32.xlu0 %v750, 127
      %v776 = vpop.permute.xlu0 %775
      %777 = vrot.lane.b32.xlu0 %v763, 127
      %v778 = vpop.permute.xlu0 %777
      %779 = vrot.lane.b32.xlu0 %v751, 127
      %v780 = vpop.permute.xlu0 %779
      %781 = vrot.lane.b32.xlu0 %v752, 127
      %v782 = vpop.permute.xlu0 %781
      %783 = vrot.lane.b32.xlu0 %v764, 127
      %v784 = vpop.permute.xlu0 %783
      %v785 = vsel %vm374, %v774, %v776
      %v786 = vsel %vm374, %v776, %v778
      %v787 = vsel %vm374, %v780, %v782
      %v788 = vsel %vm374, %v782, %v784
      %v793 = vmul.f32 %v765, %v785
      %v794 = vmul.f32 %v766, %v786
      %v795 = vmul.f32 %v765, %v787
      %v796 = vmul.f32 %v766, %v788
      %v797 = vadd.f32 %v759, %v793
      %v798 = vadd.f32 %v760, %v794
      %v799 = vadd.f32 %v761, %v795
      %v800 = vadd.f32 %v762, %v796
      %v801 = vperm.slane %v745, 2
      %v802 = vperm.slane %v746, 2
      %803 = vrot.lane.b32.xlu0 %v749, 126
      %v804 = vpop.permute.xlu0 %803
      %805 = vrot.lane.b32.xlu0 %v750, 126
      %v806 = vpop.permute.xlu0 %805
      %807 = vrot.lane.b32.xlu0 %v763, 126
      %v808 = vpop.permute.xlu0 %807
      %809 = vrot.lane.b32.xlu0 %v751, 126
      %v810 = vpop.permute.xlu0 %809
      %811 = vrot.lane.b32.xlu0 %v752, 126
      %v812 = vpop.permute.xlu0 %811
      %813 = vrot.lane.b32.xlu0 %v764, 126
      %v814 = vpop.permute.xlu0 %813
      %v815 = vsel %vm413, %v804, %v806
      %v816 = vsel %vm413, %v806, %v808
      %v817 = vsel %vm413, %v810, %v812
      %v818 = vsel %vm413, %v812, %v814
      %v823 = vmul.f32 %v801, %v815
      %v824 = vmul.f32 %v802, %v816
      %v825 = vmul.f32 %v801, %v817
      %v826 = vmul.f32 %v802, %v818
      %v827 = vadd.f32 %v797, %v823
      %v828 = vadd.f32 %v798, %v824
      %v829 = vadd.f32 %v799, %v825
      %v830 = vadd.f32 %v800, %v826
      %v831 = vperm.slane %v745, 3
      %v832 = vperm.slane %v746, 3
      %833 = vrot.lane.b32.xlu0 %v749, 112
      %v834 = vpop.permute.xlu0 %833
      %835 = vrot.lane.b32.xlu0 %v750, 112
      %v836 = vpop.permute.xlu0 %835
      %837 = vrot.lane.b32.xlu0 %v763, 112
      %v838 = vpop.permute.xlu0 %837
      %839 = vrot.lane.b32.xlu0 %v751, 112
      %v840 = vpop.permute.xlu0 %839
      %841 = vrot.lane.b32.xlu0 %v752, 112
      %v842 = vpop.permute.xlu0 %841
      %843 = vrot.lane.b32.xlu0 %v764, 112
      %v844 = vpop.permute.xlu0 %843
      %v845 = vsel %vm452, %v834, %v836
      %v846 = vsel %vm452, %v836, %v838
      %v847 = vsel %vm452, %v840, %v842
      %v848 = vsel %vm452, %v842, %v844
      %v853 = vmul.f32 %v831, %v845
      %v854 = vmul.f32 %v832, %v846
      %v855 = vmul.f32 %v831, %v847
      %v856 = vmul.f32 %v832, %v848
      %v857 = vadd.f32 %v827, %v853
      %v858 = vadd.f32 %v828, %v854
      %v859 = vadd.f32 %v829, %v855
      %v860 = vadd.f32 %v830, %v856
      %v861 = vperm.slane %v745, 4
      %v862 = vperm.slane %v746, 4
      %863 = vrot.lane.b32.xlu0 %v749, 111
      %v864 = vpop.permute.xlu0 %863
      %865 = vrot.lane.b32.xlu0 %v750, 111
      %v866 = vpop.permute.xlu0 %865
      %867 = vrot.lane.b32.xlu0 %v763, 111
      %v868 = vpop.permute.xlu0 %867
      %869 = vrot.lane.b32.xlu0 %v751, 111
      %v870 = vpop.permute.xlu0 %869
      %871 = vrot.lane.b32.xlu0 %v752, 111
      %v872 = vpop.permute.xlu0 %871
      %873 = vrot.lane.b32.xlu0 %v764, 111
      %v874 = vpop.permute.xlu0 %873
      %v875 = vsel %vm491, %v864, %v866
      %v876 = vsel %vm491, %v866, %v868
      %v877 = vsel %vm491, %v870, %v872
      %v878 = vsel %vm491, %v872, %v874
      %v883 = vmul.f32 %v861, %v875
      %v884 = vmul.f32 %v862, %v876
      %v885 = vmul.f32 %v861, %v877
      %v886 = vmul.f32 %v862, %v878
      %v887 = vadd.f32 %v857, %v883
      %v888 = vadd.f32 %v858, %v884
      %v889 = vadd.f32 %v859, %v885
      %v890 = vadd.f32 %v860, %v886
      %v891 = vperm.slane %v745, 5
      %v892 = vperm.slane %v746, 5
      %893 = vrot.lane.b32.xlu0 %v749, 110
      %v894 = vpop.permute.xlu0 %893
      %895 = vrot.lane.b32.xlu0 %v750, 110
      %v896 = vpop.permute.xlu0 %895
      %897 = vrot.lane.b32.xlu0 %v763, 110
      %v898 = vpop.permute.xlu0 %897
      %899 = vrot.lane.b32.xlu0 %v751, 110
      %v900 = vpop.permute.xlu0 %899
      %901 = vrot.lane.b32.xlu0 %v752, 110
      %v902 = vpop.permute.xlu0 %901
      %903 = vrot.lane.b32.xlu0 %v764, 110
      %v904 = vpop.permute.xlu0 %903
      %v905 = vsel %vm530, %v894, %v896
      %v906 = vsel %vm530, %v896, %v898
      %v907 = vsel %vm530, %v900, %v902
      %v908 = vsel %vm530, %v902, %v904
      %v913 = vmul.f32 %v891, %v905
      %v914 = vmul.f32 %v892, %v906
      %v915 = vmul.f32 %v891, %v907
      %v916 = vmul.f32 %v892, %v908
      %v917 = vadd.f32 %v887, %v913
      %v918 = vadd.f32 %v888, %v914
      %v919 = vadd.f32 %v889, %v915
      %v920 = vadd.f32 %v890, %v916
      %v921 = vperm.slane %v745, 6
      %v922 = vperm.slane %v746, 6
      %923 = vrot.lane.b32.xlu0 %v749, 96
      %v924 = vpop.permute.xlu0 %923
      %925 = vrot.lane.b32.xlu0 %v750, 96
      %v926 = vpop.permute.xlu0 %925
      %927 = vrot.lane.b32.xlu0 %v763, 96
      %v928 = vpop.permute.xlu0 %927
      %929 = vrot.lane.b32.xlu0 %v751, 96
      %v930 = vpop.permute.xlu0 %929
      %931 = vrot.lane.b32.xlu0 %v752, 96
      %v932 = vpop.permute.xlu0 %931
      %933 = vrot.lane.b32.xlu0 %v764, 96
      %v934 = vpop.permute.xlu0 %933
      %v935 = vsel %vm569, %v924, %v926
      %v936 = vsel %vm569, %v926, %v928
      %v937 = vsel %vm569, %v930, %v932
      %v938 = vsel %vm569, %v932, %v934
      %v943 = vmul.f32 %v921, %v935
      %v944 = vmul.f32 %v922, %v936
      %v945 = vmul.f32 %v921, %v937
      %v946 = vmul.f32 %v922, %v938
      %v947 = vadd.f32 %v917, %v943
      %v948 = vadd.f32 %v918, %v944
      %v949 = vadd.f32 %v919, %v945
      %v950 = vadd.f32 %v920, %v946
      %v951 = vperm.slane %v745, 7
      %v952 = vperm.slane %v746, 7
      %953 = vrot.lane.b32.xlu0 %v749, 95
      %v954 = vpop.permute.xlu0 %953
      %955 = vrot.lane.b32.xlu0 %v750, 95
      %v956 = vpop.permute.xlu0 %955
      %957 = vrot.lane.b32.xlu0 %v763, 95
      %v958 = vpop.permute.xlu0 %957
      %959 = vrot.lane.b32.xlu0 %v751, 95
      %v960 = vpop.permute.xlu0 %959
      %961 = vrot.lane.b32.xlu0 %v752, 95
      %v962 = vpop.permute.xlu0 %961
      %963 = vrot.lane.b32.xlu0 %v764, 95
      %v964 = vpop.permute.xlu0 %963
      %v965 = vsel %vm608, %v954, %v956
      %v966 = vsel %vm608, %v956, %v958
      %v967 = vsel %vm608, %v960, %v962
      %v968 = vsel %vm608, %v962, %v964
      %v973 = vmul.f32 %v951, %v965
      %v974 = vmul.f32 %v952, %v966
      %v975 = vmul.f32 %v951, %v967
      %v976 = vmul.f32 %v952, %v968
      %v977 = vadd.f32 %v947, %v973
      %v978 = vadd.f32 %v948, %v974
      %v979 = vadd.f32 %v949, %v975
      %v980 = vadd.f32 %v950, %v976
      %v981 = vperm.slane %v747, 0
      %v982 = vperm.slane %v748, 0
      %983 = vrot.lane.b32.xlu0 %v749, 94
      %v984 = vpop.permute.xlu0 %983
      %985 = vrot.lane.b32.xlu0 %v750, 94
      %v986 = vpop.permute.xlu0 %985
      %987 = vrot.lane.b32.xlu0 %v763, 94
      %v988 = vpop.permute.xlu0 %987
      %989 = vrot.lane.b32.xlu0 %v751, 94
      %v990 = vpop.permute.xlu0 %989
      %991 = vrot.lane.b32.xlu0 %v752, 94
      %v992 = vpop.permute.xlu0 %991
      %993 = vrot.lane.b32.xlu0 %v764, 94
      %v994 = vpop.permute.xlu0 %993
      %v995 = vsel %vm647, %v984, %v986
      %v996 = vsel %vm647, %v986, %v988
      %v997 = vsel %vm647, %v990, %v992
      %v998 = vsel %vm647, %v992, %v994
      %v1003 = vmul.f32 %v981, %v995
      %v1004 = vmul.f32 %v982, %v996
      %v1005 = vmul.f32 %v981, %v997
      %v1006 = vmul.f32 %v982, %v998
      %v1007 = vadd.f32 %v977, %v1003
      %v1008 = vadd.f32 %v978, %v1004
      %v1009 = vadd.f32 %v979, %v1005
      %v1010 = vadd.f32 %v980, %v1006
      %v1011 = vmul.f32 %v1007, %v743
      %v1012 = vmul.f32 %v1008, %v744
      %v1013 = vmul.f32 %v1009, %v743
      %v1014 = vmul.f32 %v1010, %v744
      %1015 = vst [vmem:[%s318] sm:$0xff] %v1011
      %1016 = vst [vmem:[%s318 + $0x8] sm:$0xff] %v1012
      %1017 = vst [vmem:[%s318 + $0x10] sm:$0xff] %v1013
      %1018 = vst [vmem:[%s318 + $0x18] sm:$0xff] %v1014
      %s1019 = smul.u32 2, %s20
      %p1020 = scmp.lt.s32.totalorder %s19, 1
      %s1021 = scalar_select %p1020, %s19, 1
      %p1022 = scmp.lt.s32.totalorder %s1019, 3
      %s1023 = scalar_select %p1022, %s1019, 3
      %s1024 = smul.addr %s1023, 2
      %s1025 = smul.addr %s1021, 8
      %s1026 = sadd.s32 %s1024, %s1025
      %s1027 = smul.addr %s1026, 8
      %s1028 = scalar_lea.vmem %s4, %s1027
      // Predicated region
      $region37: #{dilate_attention.1} parent=35 // pred_check
        %p1029 = pneg %p152
      $region38: #{dilate_attention.1} parent=35 // pred_check_branch
        %1031 = sbr.rel (%p1029) target = $region40
      $region39: #{dilate_attention.1} parent=35 // pred_region
        %s1032 = smul.u32 2, %s20
      $region40: #{dilate_attention.1} parent=35 // pred_fallthru
        _
    $region36: #{dilate_attention.1} parent=5 // pred_fallthru
      _
    %p1033 = scmp.le.s32.totalorder 2, %s10
    // Predicated region
    $region41: #{dilate_attention.1} parent=5 // pred_check
      %p1034 = pneg %p1033
    $region42: #{dilate_attention.1} parent=5 // pred_check_branch
      %1036 = sbr.rel (%p1034) target = $region44
    $region43: #{dilate_attention.1} parent=5 // pred_region
      %s1037 = ssub.s32 %s10, 2
      // Predicated region
      $region45: #{dilate_attention.1} parent=43 // pred_check
        %p1038 = pneg %p158
      $region46: #{dilate_attention.1} parent=43 // pred_check_branch
        %1040 = sbr.rel (%p1038) target = $region48
      $region47: #{dilate_attention.1} parent=43 // pred_region
        %s1041 = smul.u32 2, %s22
        %p1042 = scmp.lt.s32.totalorder %s21, 1
        %s1043 = scalar_select %p1042, %s21, 1
        %p1044 = scmp.lt.s32.totalorder %s1041, 3
        %s1045 = scalar_select %p1044, %s1041, 3
        %s1046 = smul.addr %s1045, 2
        %s1047 = smul.addr %s1043, 8
        %s1048 = sadd.s32 %s1046, %s1047
        %s1049 = smul.addr %s1048, 8
        %s1050 = scalar_lea.vmem %s4, %s1049
      $region48: #{dilate_attention.1} parent=43 // pred_fallthru
        _
    $region44: #{dilate_attention.1} parent=5 // pred_fallthru
      _
  $region6: #{dilate_attention.1} parent=0 // loop_footer
    %s14 = sadd.s32 1, %s10
  $region7: #{dilate_attention.1} parent=0 // loop_footer_branch
    %9 = sbr.rel target = $region3
  $region8: #{dilate_attention.1} parent=0 // loop_exit
    _

</llo_original>
